<compile_context>
chip_gen: v6e
topology: v6e:2x2x1
jax: 0.10.0
libtpu: 0.0.40
codegen_flags: <defaults>
</compile_context>

<pallas_src>
import math

import jax
import jax.numpy as jnp
from jax.experimental import pallas as pl
from jax.experimental.pallas import tpu as pltpu


def _rff_kernel(x_ref, bt_ref, o_ref):
    # x_ref:  (TILE_N, D)     in VMEM
    # bt_ref: (D, M)          in VMEM (already scaled by 2*pi; resident)
    # o_ref:  (TILE_N, 2*M)   in VMEM
    # MXU matmul (tiny K) -> EUP cos/sin -> single lane-dense full-tile store.
    z = jnp.dot(x_ref[...], bt_ref[...], preferred_element_type=jnp.float32)
    out = jnp.concatenate([jnp.cos(z), jnp.sin(z)], axis=-1)
    o_ref[...] = out.astype(o_ref.dtype)


def rff_forward(x, B, *, tile_n=1024, out_dtype=None):
    """Pallas equivalent of RFF.forward.

    x: (N, input_dim) float32
    B: (mapping_size, input_dim) float32   (frozen random projection)
    returns: (N, 2 * mapping_size), dtype `out_dtype` (defaults to x.dtype).
    """
    n, d = x.shape
    mapping_size, d_b = B.shape
    assert d == d_b, "input_dim mismatch"
    out_dtype = out_dtype if out_dtype is not None else x.dtype

    # Fold the 2*pi scale into the frozen projection (wrapper-side, D*M tiny).
    bt = (2.0 * math.pi) * B.T  # (input_dim, mapping_size)

    # Row tiling:
    #  - small N: single full block (block == full array, (8,128) rule OK)
    #  - large N: tile_n rows per grid step (multiple of 8); pl.cdiv grid with
    #    a masked partial last block handles N % tile_n != 0.
    if n <= tile_n:
        tile_n = n
    else:
        tile_n = max(8, (tile_n // 8) * 8)
    grid = (pl.cdiv(n, tile_n),)

    out_shape = jax.ShapeDtypeStruct((n, 2 * mapping_size), out_dtype)

    return pl.pallas_call(
        _rff_kernel,
        out_shape=out_shape,
        grid_spec=pltpu.PrefetchScalarGridSpec(
            num_scalar_prefetch=0,
            grid=grid,
            in_specs=[
                # x tile marches down the rows.
                pl.BlockSpec((tile_n, d), lambda i: (i, 0)),
                # Projection is resident across all grid steps.
                pl.BlockSpec((d, mapping_size), lambda i: (0, 0)),
            ],
            out_specs=pl.BlockSpec((tile_n, 2 * mapping_size), lambda i: (i, 0)),
        ),
        compiler_params=pltpu.CompilerParams(
            # Independent row tiles -> parallel (2x on v7x's dual TensorCores).
            dimension_semantics=("parallel",)
        ),
    )(x, bt)


def rff_reference(x, B):
    z = 2.0 * math.pi * (x @ B.T)
    return jnp.concatenate([jnp.cos(z), jnp.sin(z)], axis=1)


if __name__ == "__main__":
    key = jax.random.PRNGKey(0)
    k_x, k_b, k_x2 = jax.random.split(key, 3)

    # Small shapes consistent with the module: input_dim=4, mapping_size=64.
    batch = 8
    input_dim = 4
    mapping_size = 64
    scale = 1.0

    # Deterministic "weights": B ~ Normal(0, scale), frozen (requires_grad=False).
    B = scale * jax.random.normal(k_b, (mapping_size, input_dim), dtype=jnp.float32)
    x = jax.random.normal(k_x, (batch, input_dim), dtype=jnp.float32)

    out = rff_forward(x, B)
    out = jax.block_until_ready(out)
    ref = rff_reference(x, B)
    assert out.shape == (batch, 2 * mapping_size)
    assert jnp.allclose(out, ref, atol=1e-5, rtol=1e-5), "mismatch vs reference (small)"

    # Second check exercising the tiled path (partial last block, N % tile_n != 0).
    n_big = 2500
    x2 = jax.random.normal(k_x2, (n_big, input_dim), dtype=jnp.float32)
    out2 = rff_forward(x2, B, tile_n=1024)
    out2 = jax.block_until_ready(out2)
    ref2 = rff_reference(x2, B)
    assert out2.shape == (n_big, 2 * mapping_size)
    assert jnp.allclose(out2, ref2, atol=1e-5, rtol=1e-5), "mismatch vs reference (tiled)"

    print("KERNEL_OK")
</pallas_src>

<mosaic_0001>
module attributes {stable_mosaic.version = 11 : i64} {
  func.func @_rff_kernel(%arg0: i32, %arg1: memref<8x4xf32, #tpu.memory_space<vmem>>, %arg2: memref<4x64xf32, #tpu.memory_space<vmem>>, %arg3: memref<8x128xf32, #tpu.memory_space<vmem>>) attributes {dimension_semantics = [#tpu.dimension_semantics<parallel>], iteration_bounds = array<i64: 1>, scalar_prefetch = 0 : i64, scratch_operands = 0 : i64, tpu.core_type = #tpu.core_type<tc>, window_params = [{transform_indices = @transform_0, window_bounds = array<i64: 8, 4>}, {pipeline_mode = #tpu.pipeline_mode<synchronous>, transform_indices = @transform_1, window_bounds = array<i64: 4, 64>}, {transform_indices = @transform_2, window_bounds = array<i64: 8, 128>}]} {
    %c0 = arith.constant 0 : index
    %c0_0 = arith.constant 0 : index
    %0 = vector.load %arg1[%c0, %c0_0] : memref<8x4xf32, #tpu.memory_space<vmem>>, vector<8x4xf32>
    %c0_1 = arith.constant 0 : index
    %c0_2 = arith.constant 0 : index
    %1 = vector.load %arg2[%c0_1, %c0_2] : memref<4x64xf32, #tpu.memory_space<vmem>>, vector<4x64xf32>
    %cst = arith.constant dense<0.000000e+00> : vector<8x64xf32>
    %2 = tpu.matmul %0, %1, %cst {dimension_numbers = #tpu.dot_dimension_numbers<[1], [0], [0], [1], [0, 0, 1, 1], [], []>} : vector<8x4xf32>, vector<4x64xf32>, vector<8x64xf32> -> vector<8x64xf32>
    %3 = math.cos %2 : vector<8x64xf32>
    %4 = math.sin %2 : vector<8x64xf32>
    %5 = tpu.concatenate %3, %4 in 1 : vector<8x64xf32>, vector<8x64xf32> -> vector<8x128xf32>
    %c0_3 = arith.constant 0 : index
    %c0_4 = arith.constant 0 : index
    %6 = vector.load %arg3[%c0_3, %c0_4] : memref<8x128xf32, #tpu.memory_space<vmem>>, vector<8x128xf32>
    tpu.vector_store %arg3[%c0_3, %c0_4], %5 {strides = array<i32>} : memref<8x128xf32, #tpu.memory_space<vmem>>, vector<8x128xf32>,
    return
  }
  func.func @transform_0(%arg0: i32) -> (i32, i32) {
    %c0_i32 = arith.constant 0 : i32
    %c0_i32_0 = arith.constant 0 : i32
    return %arg0, %c0_i32 : i32, i32
  }
  func.func @transform_1(%arg0: i32) -> (i32, i32) {
    %c0_i32 = arith.constant 0 : i32
    %c0_i32_0 = arith.constant 0 : i32
    %c0_i32_1 = arith.constant 0 : i32
    return %c0_i32, %c0_i32_0 : i32, i32
  }
  func.func @transform_2(%arg0: i32) -> (i32, i32) {
    %c0_i32 = arith.constant 0 : i32
    %c0_i32_0 = arith.constant 0 : i32
    return %arg0, %c0_i32 : i32, i32
  }
}

</mosaic_0001>

<llo_original>
// kernel: tpu_custom_call.1
$region0: #{tpu_custom_call.1}
  #allocation0 [shape = 'u32[]', space=smem, size = 0x4, offset = 0x4, fixed_abs, tag = 'smem constant byte address 0x4 - core index']
  #allocation1 [shape = 'u32[144,128]{1,0:T(1,128)}', space=vmem, size = 0x12000, scoped, tag = 'internal scratch']
  %s0 = inlined_call_operand.vmem [shape: f32[8,4], index: 0, kind: input, shape index: {}]
  %s1 = inlined_call_operand.vmem [shape: f32[4,64], index: 1, kind: input, shape index: {}]
  %s2 = inlined_call_operand.hbm [shape: f32[8,128], index: 2, kind: output, shape index: {}]
  %s3 = sld [smem:[#allocation0]]
  $region18: #{tpu_custom_call.1} parent=0
    _
  %s5 = ssub.s32 1, %s3
  %s6 = scalar_select 0, %s5, %s3
  $region1: #{tpu_custom_call.1} parent=0
    #allocation2 [shape = 'u8[4096]{0}', space=vmem, size = 0x1000, scoped, tag = 'output window, operand 0, single buffered']
    #allocation3 [shape = 's32[1]{0}', space=sflag, size = 0x4, scoped, tag = 'scoped memory for tpu_custom_call.1']
    %7 = vsyncpa [#allocation3], 0
    // Predicated region
    $region2: #{tpu_custom_call.1} parent=1 // pred_check
      _
    $region3: #{tpu_custom_call.1} parent=1 // pred_check_branch
      %9 = sbr.rel (0) target = $region5
    $region4: #{tpu_custom_call.1} parent=1 // pred_region
      _
    $region5: #{tpu_custom_call.1} parent=1 // pred_fallthru
      _
    // Predicated region
    $region6: #{tpu_custom_call.1} parent=1 // pred_check
      _
    $region7: #{tpu_custom_call.1} parent=1 // pred_check_branch
      %11 = sbr.rel (0) target = $region9
    $region8: #{tpu_custom_call.1} parent=1 // pred_region
      _
    $region9: #{tpu_custom_call.1} parent=1 // pred_fallthru
      _
    %v12 = vld [vmem:[%s0] sm:$0xff]
    %v13 = vld [vmem:[%s1] sm:$0xf]
    %vm14 = vcmask 31744
    %v16 = vsel %vm14, %v12, 0
    %vm18 = vcmask 1043456
    %v20 = vsel %vm18, %v13, 0
    %22 = vmatprep.subr.mxu0 0.0
    %23 = vmatpush1.msra.mxu0 0.0
    %24 = vmatprep.subr.mxu0 0.0
    %25 = vmatpush1.msra.mxu0 0.0
    %26 = vmatprep.subr.mxu0 0.0
    %27 = vmatpush1.msra.mxu0 0.0
    %28 = vmatprep.subr.mxu0 0.0
    %29 = vmatpush1.msra.mxu0 0.0
    %30 = vmatprep.subr.mxu0 0.0
    %31 = vmatpush1.msra.mxu0 0.0
    %32 = vmatprep.subr.mxu0 0.0
    %33 = vmatpush1.msra.mxu0 0.0
    %34 = vmatprep.subr.mxu0 0.0
    %35 = vmatpush1.msra.mxu0 0.0
    %36 = vmatprep.subr.mxu0 0.0
    %37 = vmatpush1.msra.mxu0 0.0
    %38 = vmatprep.subr.mxu0 0.0
    %39 = vmatpush1.msra.mxu0 0.0
    %40 = vmatprep.subr.mxu0 0.0
    %41 = vmatpush1.msra.mxu0 0.0
    %42 = vmatprep.subr.mxu0 0.0
    %43 = vmatpush1.msra.mxu0 0.0
    %44 = vmatprep.subr.mxu0 0.0
    %45 = vmatpush1.msra.mxu0 0.0
    %46 = vmatprep.subr.mxu0 0.0
    %47 = vmatpush1.msra.mxu0 0.0
    %48 = vmatprep.subr.mxu0 0.0
    %49 = vmatpush1.msra.mxu0 0.0
    %50 = vmatprep.subr.mxu0 0.0
    %51 = vmatpush1.msra.mxu0 0.0
    %52 = vmatprep.subr.mxu0 0.0
    %53 = vmatpush1.msra.mxu0 %v20
    %54 = vmatprep.subr.mxu0 0.0
    %55 = vmatpush2.msra.mxu0 0.0
    %56 = vmatprep.subr.mxu0 0.0
    %57 = vmatpush2.msra.mxu0 0.0
    %58 = vmatprep.subr.mxu0 0.0
    %59 = vmatpush2.msra.mxu0 0.0
    %60 = vmatprep.subr.mxu0 0.0
    %61 = vmatpush2.msra.mxu0 0.0
    %62 = vmatprep.subr.mxu0 0.0
    %63 = vmatpush2.msra.mxu0 0.0
    %64 = vmatprep.subr.mxu0 0.0
    %65 = vmatpush2.msra.mxu0 0.0
    %66 = vmatprep.subr.mxu0 0.0
    %67 = vmatpush2.msra.mxu0 0.0
    %68 = vmatprep.subr.mxu0 0.0
    %69 = vmatpush2.msra.mxu0 0.0
    %70 = vmatprep.subr.mxu0 0.0
    %71 = vmatpush2.msra.mxu0 0.0
    %72 = vmatprep.subr.mxu0 0.0
    %73 = vmatpush2.msra.mxu0 0.0
    %74 = vmatprep.subr.mxu0 0.0
    %75 = vmatpush2.msra.mxu0 0.0
    %76 = vmatprep.subr.mxu0 0.0
    %77 = vmatpush2.msra.mxu0 0.0
    %78 = vmatprep.subr.mxu0 0.0
    %79 = vmatpush2.msra.mxu0 0.0
    %80 = vmatprep.subr.mxu0 0.0
    %81 = vmatpush2.msra.mxu0 0.0
    %82 = vmatprep.subr.mxu0 0.0
    %83 = vmatpush2.msra.mxu0 0.0
    %84 = vmatprep.subr.mxu0 0.0
    %85 = vmatpush2.msra.mxu0 0.0
    %86 = vmatprep.mubr.f32.mxu0 0.0
    %87 = vmatmul.mubr.f32.gmra.mxu0 %v16
    %v88 = vpop.f32.mrf.mxu0
    %v89 = vadd.f32 0.0, %v88
    %v90 = vpop.f32.mrf.mxu0
    %91 = vdwg.mxu0
    %v92 = vand.u32 2147483647, %v89
    %vm93 = vcmp.le.f32.partialorder %v92, 0.7853982
    %vm94 = vcmp.lt.s32.totalorder %v89, 0
    %v95 = vand.u32 %v89, 2139095040
    %v96 = vshrl.u32 %v95, 23
    %v97 = vsub.s32 %v96, 127
    %v98 = vand.u32 2147483647, %v89
    %v99 = vand.u32 %v98, 8388607
    %v100 = vor.u32 %v99, 8388608
    %v101 = vsub.s32 0, %v100
    %v102 = vadd.s32 %v97, 1
    %vm103 = vcmp.gt.s32.totalorder %v102, 0
    %v104 = vsel %vm103, %v102, 0
    %v105 = vshrl.u32 %v104, 5
    %v106 = vand.u32 %v104, 31
    %v107 = vsub.s32 32, %v106
    %v108 = vshrl.u32 683565275, %v107
    %v109 = vshll.u32 683565275, %v106
    %v110 = vshrl.u32 2475754826, %v107
    %v111 = vor.u32 %v109, %v110
    %v112 = vshll.u32 2475754826, %v106
    %v113 = vshrl.u32 2131351028, %v107
    %v114 = vor.u32 %v112, %v113
    %v115 = vshll.u32 2131351028, %v106
    %v116 = vshrl.u32 2102212464, %v107
    %v117 = vor.u32 %v115, %v116
    %v118 = vshll.u32 2102212464, %v106
    %v119 = vshrl.u32 920167782, %v107
    %v120 = vor.u32 %v118, %v119
    %v121 = vshll.u32 920167782, %v106
    %v122 = vshrl.u32 1326507024, %v107
    %v123 = vor.u32 %v121, %v122
    %vm124 = vcmp.lt.s32.totalorder %v105, 1
    %vm125 = vcmp.lt.s32.totalorder %v105, 2
    %vm126 = vcmp.lt.s32.totalorder %v105, 3
    %vm127 = vcmp.lt.s32.totalorder %v105, 4
    %v128 = vsel %vm124, %v108, %v111
    %v129 = vsel %vm127, %v117, 2102212464
    %v130 = vsel %vm126, %v114, %v129
    %v131 = vsel %vm125, %v128, %v130
    %v132 = vsel %vm124, %v111, %v114
    %v133 = vsel %vm127, %v120, 920167782
    %v134 = vsel %vm126, %v117, %v133
    %v135 = vsel %vm125, %v132, %v134
    %v136 = vsel %vm124, %v114, %v117
    %v137 = vsel %vm127, %v123, 1326507024
    %v138 = vsel %vm126, %v120, %v137
    %v139 = vsel %vm125, %v136, %v138
    %v140 = vshll.u32 %v100, 8
    %v141 = vmul.u32.u64.compose %v140, %v139
    %v142 = vextract.low.u32 %v141
    %v143 = vextract.high.u32 %v141
    %v144 = vmul.u32.u64.compose %v140, %v135
    %v145 = vextract.low.u32 %v144
    %v146 = vextract.high.u32 %v144
    %v147 = vmul.u32 %v140, %v131
    %v148 = vadd.s32 %v143, %v145
    %vm149 = vc.u32 %v143, %v145
    %v150 = vadd.s32 %v146, 1
    %v151 = vsel %vm149, %v150, %v146
    %v152 = vadd.s32 %v147, %v151
    %v153 = vadd.s32 %v152, 536870912
    %v154 = vshrl.u32 %v153, 30
    %v155 = vshll.u32 %v154, 30
    %v156 = vsub.s32 %v152, %v155
    %vm157 = vcmp.lt.s32.totalorder %v156, 0
    %v158 = vsub.s32 0, %v156
    %v159 = vsel %vm157, %v158, %v156
    %v160 = vclz %v159
    %v161 = vsub.s32 %v160, 2
    %vm162 = vcmp.gt.s32.totalorder 0, %v161
    %v163 = vsel %vm162, 0, %v161
    %v164 = vsub.s32 32, %v163
    %v165 = vshll.u32 %v156, %v163
    %v166 = vshrl.u32 %v148, %v164
    %v167 = vor.u32 %v165, %v166
    %v168 = vsub.s32 4294967266, %v163
    %v169 = vadd.s32 %v168, 127
    %v170 = vshll.u32 %v169, 23
    %v171 = vor.u32 4788187, %v170
    %v172 = vand.u32 2147483647, %v171
    %v174 = vcvt.s32.f32 %v167
    %v175 = vmul.f32 %v174, %v172
    %v176 = vxor.u32 %v175, 2147483648
    %v177 = vsel %vm94, %v176, %v175
    %v178 = vsub.s32 4, %v154
    %v179 = vsel %vm94, %v178, %v154
    %v180 = vsel %vm93, %v89, %v177
    %v181 = vsel %vm93, 0, %v179
    %v182 = vcosq.f32.pop %v180
    %v183 = vsinq.f32.pop %v180
    %vm184 = vweird.f32 %v89
    %v185 = vand.u32 %v181, 3
    %vm186 = vcmp.lt.s32.totalorder %v185, 2
    %vm187 = vcmp.eq.s32.totalorder %v185, 0
    %v188 = vxor.u32 %v183, 2147483648
    %v189 = vsel %vm187, %v182, %v188
    %vm190 = vcmp.eq.s32.totalorder %v185, 2
    %v191 = vxor.u32 %v182, 2147483648
    %v192 = vsel %vm190, %v191, %v183
    %v193 = vsel %vm186, %v189, %v192
    %v194 = vsel %vm184, nan, %v193
    %v195 = vand.u32 2147483647, %v89
    %vm196 = vcmp.le.f32.partialorder %v195, 0.7853982
    %vm197 = vcmp.lt.s32.totalorder %v89, 0
    %v198 = vand.u32 %v89, 2139095040
    %v199 = vshrl.u32 %v198, 23
    %v200 = vsub.s32 %v199, 127
    %v201 = vand.u32 2147483647, %v89
    %v202 = vand.u32 %v201, 8388607
    %v203 = vor.u32 %v202, 8388608
    %v204 = vsub.s32 0, %v203
    %v205 = vadd.s32 %v200, 1
    %vm206 = vcmp.gt.s32.totalorder %v205, 0
    %v207 = vsel %vm206, %v205, 0
    %v208 = vshrl.u32 %v207, 5
    %v209 = vand.u32 %v207, 31
    %v210 = vsub.s32 32, %v209
    %v211 = vshrl.u32 683565275, %v210
    %v212 = vshll.u32 683565275, %v209
    %v213 = vshrl.u32 2475754826, %v210
    %v214 = vor.u32 %v212, %v213
    %v215 = vshll.u32 2475754826, %v209
    %v216 = vshrl.u32 2131351028, %v210
    %v217 = vor.u32 %v215, %v216
    %v218 = vshll.u32 2131351028, %v209
    %v219 = vshrl.u32 2102212464, %v210
    %v220 = vor.u32 %v218, %v219
    %v221 = vshll.u32 2102212464, %v209
    %v222 = vshrl.u32 920167782, %v210
    %v223 = vor.u32 %v221, %v222
    %v224 = vshll.u32 920167782, %v209
    %v225 = vshrl.u32 1326507024, %v210
    %v226 = vor.u32 %v224, %v225
    %vm227 = vcmp.lt.s32.totalorder %v208, 1
    %vm228 = vcmp.lt.s32.totalorder %v208, 2
    %vm229 = vcmp.lt.s32.totalorder %v208, 3
    %vm230 = vcmp.lt.s32.totalorder %v208, 4
    %v231 = vsel %vm227, %v211, %v214
    %v232 = vsel %vm230, %v220, 2102212464
    %v233 = vsel %vm229, %v217, %v232
    %v234 = vsel %vm228, %v231, %v233
    %v235 = vsel %vm227, %v214, %v217
    %v236 = vsel %vm230, %v223, 920167782
    %v237 = vsel %vm229, %v220, %v236
    %v238 = vsel %vm228, %v235, %v237
    %v239 = vsel %vm227, %v217, %v220
    %v240 = vsel %vm230, %v226, 1326507024
    %v241 = vsel %vm229, %v223, %v240
    %v242 = vsel %vm228, %v239, %v241
    %v243 = vshll.u32 %v203, 8
    %v244 = vmul.u32.u64.compose %v243, %v242
    %v245 = vextract.low.u32 %v244
    %v246 = vextract.high.u32 %v244
    %v247 = vmul.u32.u64.compose %v243, %v238
    %v248 = vextract.low.u32 %v247
    %v249 = vextract.high.u32 %v247
    %v250 = vmul.u32 %v243, %v234
    %v251 = vadd.s32 %v246, %v248
    %vm252 = vc.u32 %v246, %v248
    %v253 = vadd.s32 %v249, 1
    %v254 = vsel %vm252, %v253, %v249
    %v255 = vadd.s32 %v250, %v254
    %v256 = vadd.s32 %v255, 536870912
    %v257 = vshrl.u32 %v256, 30
    %v258 = vshll.u32 %v257, 30
    %v259 = vsub.s32 %v255, %v258
    %vm260 = vcmp.lt.s32.totalorder %v259, 0
    %v261 = vsub.s32 0, %v259
    %v262 = vsel %vm260, %v261, %v259
    %v263 = vclz %v262
    %v264 = vsub.s32 %v263, 2
    %vm265 = vcmp.gt.s32.totalorder 0, %v264
    %v266 = vsel %vm265, 0, %v264
    %v267 = vsub.s32 32, %v266
    %v268 = vshll.u32 %v259, %v266
    %v269 = vshrl.u32 %v251, %v267
    %v270 = vor.u32 %v268, %v269
    %v271 = vsub.s32 4294967266, %v266
    %v272 = vadd.s32 %v271, 127
    %v273 = vshll.u32 %v272, 23
    %v274 = vor.u32 4788187, %v273
    %v275 = vand.u32 2147483647, %v274
    %v277 = vcvt.s32.f32 %v270
    %v278 = vmul.f32 %v277, %v275
    %v279 = vxor.u32 %v278, 2147483648
    %v280 = vsel %vm197, %v279, %v278
    %v281 = vsub.s32 4, %v257
    %v282 = vsel %vm197, %v281, %v257
    %v283 = vsel %vm196, %v89, %v280
    %v284 = vsel %vm196, 0, %v282
    %v285 = vcosq.f32.pop %v283
    %v286 = vsinq.f32.pop %v283
    %vm287 = vweird.f32 %v89
    %v288 = vadd.s32 %v284, 3
    %v289 = vand.u32 %v288, 3
    %vm290 = vcmp.lt.s32.totalorder %v289, 2
    %vm291 = vcmp.eq.s32.totalorder %v289, 0
    %v292 = vxor.u32 %v286, 2147483648
    %v293 = vsel %vm291, %v285, %v292
    %vm294 = vcmp.eq.s32.totalorder %v289, 2
    %v295 = vxor.u32 %v285, 2147483648
    %v296 = vsel %vm294, %v295, %v286
    %v297 = vsel %vm290, %v293, %v296
    %v298 = vsel %vm287, nan, %v297
    %300 = vrot.lane.b32.xlu0 %v298, 64
    %v301 = vpop.permute.xlu0 %300
    %vm303 = vcmask 523264
    %v304 = vsel %vm303, %v194, %v301
    %305 = vst [vmem:[#allocation2] sm:$0xff] %v304
    // Predicated region
    $region10: #{tpu_custom_call.1} parent=1 // pred_check
      _
    $region11: #{tpu_custom_call.1} parent=1 // pred_check_branch
      %307 = sbr.rel (0) target = $region13
    $region12: #{tpu_custom_call.1} parent=1 // pred_region
      %s309 = ssub.s32 128, 128
      %310 = vsyncadd [#allocation3], %s309
      %s312 = sshll.u32 [#allocation2], 4
      %s313 = int_to_ptr.vmem [resolvable:$true] %s312
      %315 = dma.vmem_to_hbm [thread:$0]  %s313, 128, %s2, [#allocation3]
    $region13: #{tpu_custom_call.1} parent=1 // pred_fallthru
      _
    // Predicated region
    $region14: #{tpu_custom_call.1} parent=1 // pred_check
      _
    $region15: #{tpu_custom_call.1} parent=1 // pred_check_branch
      %317 = sbr.rel (0) target = $region17
    $region16: #{tpu_custom_call.1} parent=1 // pred_region
      %318 = dma.done [#allocation3], 128
    $region17: #{tpu_custom_call.1} parent=1 // pred_fallthru
      _
    %319 = vsyncpa [#allocation3], 1

</llo_original>
